<compile_context>
chip_gen: v7x
topology: tpu7x:2x2x1
jax: 0.10.0
libtpu: 0.0.40
codegen_flags: <defaults>
</compile_context>

<pallas_src>
import functools

import jax
import jax.numpy as jnp
from jax.experimental import pallas as pl
from jax.experimental.pallas import tpu as pltpu


def _ensemble_kernel(que_ref, wall_ref, ans_ref, bias_ref, out_ref, *, E, C, D):
    # que_ref : (TB, D)      -- B tile of questions
    # wall_ref: (D, E*D)     -- all expert weights, lane-dense, VMEM-resident
    # ans_ref : (TB, C, D)   -- answers for this B tile
    # bias_ref: (1, E*C)     -- all expert biases, flattened (e-major)
    # out_ref : (TB, E*C)    -- logits for this B tile, flattened (e-major)
    que = que_ref[...]                       # (TB, D)
    w_all = wall_ref[...]                    # (D, E*D)
    ans = ans_ref[...]                       # (TB, C, D)

    # One fused MXU matmul for all experts, f32 accumulation.
    qw_all = jnp.dot(que, w_all, preferred_element_type=jnp.float32)  # (TB, E*D)

    # Per-expert scoring: VPU multiply + lane-axis (XLU) reduce.  E is a small
    # static constant so this Python loop fully unrolls; static slices are
    # view-like (no runtime cost).
    scores = []
    for e in range(E):
        qw_e = qw_all[:, e * D:(e + 1) * D]                   # (TB, D)
        s_e = jnp.sum(qw_e[:, None, :] * ans, axis=-1)        # (TB, C)
        scores.append(s_e)
    scores = jnp.concatenate(scores, axis=-1)                 # (TB, E*C)

    # Single full-tile store (one write region per grid step).
    out_ref[...] = (scores + bias_ref[...]).astype(out_ref.dtype)


def _pick_b_tile(B):
    # Biggest tile that evenly divides B; multiples of 8 preferred so the
    # sublane dim of the (TB, D) / (TB, E*C) blocks stays aligned at large B.
    for tb in (512, 256, 128, 64, 32, 16, 8):
        if B % tb == 0:
            return tb
    return B  # small / odd batches: single full-B tile (full-dim blocks are legal)


def ensemble_forward(que, answers, weights, biases):
    """Run every expert on (que, answers) and stack results along dim=1.

    que:      (B, D) float32
    answers:  (B, C, D) float32
    weights:  (E, D, D) float32   -- expert e maps que via que @ weights[e]
    biases:   (E, C) float32
    returns:  (B, E, C) float32   -- matches torch.stack(e_outputs, dim=1)
    """
    B, D = que.shape
    _, C, _ = answers.shape
    E = weights.shape[0]

    # One-time wrapper-side repacking into a lane-dense slab:
    #   W_all[d, e*D + d'] = weights[e, d, d']
    w_all = jnp.transpose(weights, (1, 0, 2)).reshape(D, E * D)
    bias_flat = biases.reshape(1, E * C)

    tb = _pick_b_tile(B)
    grid = (B // tb,)

    kernel = functools.partial(_ensemble_kernel, E=E, C=C, D=D)

    flops = 2 * B * D * (E * D) + 2 * B * E * C * D
    bytes_accessed = 4 * (B * D + D * E * D + B * C * D + E * C + B * E * C)

    out_flat = pl.pallas_call(
        kernel,
        out_shape=jax.ShapeDtypeStruct((B, E * C), jnp.float32),
        grid_spec=pltpu.PrefetchScalarGridSpec(
            num_scalar_prefetch=0,
            grid=grid,
            in_specs=[
                pl.BlockSpec((tb, D), lambda i: (i, 0)),        # que tile
                pl.BlockSpec((D, E * D), lambda i: (0, 0)),     # all weights (resident)
                pl.BlockSpec((tb, C, D), lambda i: (i, 0, 0)),  # answers tile
                pl.BlockSpec((1, E * C), lambda i: (0, 0)),     # all biases (resident)
            ],
            out_specs=pl.BlockSpec((tb, E * C), lambda i: (i, 0)),
        ),
        compiler_params=pltpu.CompilerParams(
            dimension_semantics=("parallel",),   # B tiles are independent
        ),
        cost_estimate=pl.CostEstimate(
            flops=flops, transcendentals=0, bytes_accessed=bytes_accessed
        ),
    )(que, w_all, answers, bias_flat)

    # Free metadata reshape: (B, E*C) -> (B, E, C); e-major ordering matches
    # torch.stack(e_outputs, dim=1).
    return out_flat.reshape(B, E, C)


def ensemble_forward_with_teachers(que, answers, expert_params, teacher_params=None):
    """Mirrors Ensemble.forward: stacked expert outputs; with teachers present,
    returns (student_outputs, teacher_outputs)."""
    e_w, e_b = expert_params
    outputs = ensemble_forward(que, answers, e_w, e_b)
    if teacher_params is not None:
        t_w, t_b = teacher_params
        # Teachers run under torch.no_grad() in the original.
        t_outputs = jax.lax.stop_gradient(
            ensemble_forward(que, answers, t_w, t_b)
        )
        return outputs, t_outputs
    return outputs


def _reference(que, answers, weights, biases):
    qw_ref = jnp.einsum("bd,edk->bek", que, weights)
    return jnp.einsum("bek,bck->bec", qw_ref, answers) + biases[None, :, :]


if __name__ == "__main__":
    key = jax.random.PRNGKey(0)

    # --- Case 1: small shapes consistent with the module (num_choice = 5). ---
    B, D, C, E = 2, 32, 5, 3
    k_q, k_a, k_w, k_b, key = jax.random.split(key, 5)
    que = jax.random.normal(k_q, (B, D), dtype=jnp.float32)
    answers = jax.random.normal(k_a, (B, C, D), dtype=jnp.float32)
    weights = 0.1 * jax.random.normal(k_w, (E, D, D), dtype=jnp.float32)
    biases = 0.01 * jax.random.normal(k_b, (E, C), dtype=jnp.float32)

    out = ensemble_forward_with_teachers(que, answers, (weights, biases))
    out = jax.block_until_ready(out)
    ref = _reference(que, answers, weights, biases)
    assert out.shape == (B, E, C), out.shape
    assert jnp.allclose(out, ref, atol=1e-4, rtol=1e-4), "mismatch vs reference (case 1)"

    # --- Case 2: slightly larger, exercises the multi-tile grid path. ---
    B2, D2, C2, E2 = 16, 128, 5, 4
    k_q, k_a, k_w, k_b, key = jax.random.split(key, 5)
    que2 = jax.random.normal(k_q, (B2, D2), dtype=jnp.float32)
    answers2 = jax.random.normal(k_a, (B2, C2, D2), dtype=jnp.float32)
    weights2 = 0.05 * jax.random.normal(k_w, (E2, D2, D2), dtype=jnp.float32)
    biases2 = 0.01 * jax.random.normal(k_b, (E2, C2), dtype=jnp.float32)

    out2, t_out2 = ensemble_forward_with_teachers(
        que2, answers2, (weights2, biases2), teacher_params=(weights2, biases2)
    )
    out2 = jax.block_until_ready(out2)
    ref2 = _reference(que2, answers2, weights2, biases2)
    assert out2.shape == (B2, E2, C2), out2.shape
    assert jnp.allclose(out2, ref2, atol=1e-3, rtol=1e-3), "mismatch vs reference (case 2)"
    assert jnp.allclose(t_out2, ref2, atol=1e-3, rtol=1e-3), "teacher mismatch (case 2)"

    print("KERNEL_OK")
</pallas_src>

<mosaic_0001>
module attributes {stable_mosaic.version = 11 : i64} {
  func.func @_ensemble_kernel(%arg0: i32, %arg1: memref<2x32xf32, #tpu.memory_space<vmem>>, %arg2: memref<32x96xf32, #tpu.memory_space<vmem>>, %arg3: memref<2x5x32xf32, #tpu.memory_space<vmem>>, %arg4: memref<1x15xf32, #tpu.memory_space<vmem>>, %arg5: memref<2x15xf32, #tpu.memory_space<vmem>>) attributes {dimension_semantics = [#tpu.dimension_semantics<parallel>], iteration_bounds = array<i64: 1>, scalar_prefetch = 0 : i64, scratch_operands = 0 : i64, tpu.core_type = #tpu.core_type<tc>, window_params = [{transform_indices = @transform_0, window_bounds = array<i64: 2, 32>}, {pipeline_mode = #tpu.pipeline_mode<synchronous>, transform_indices = @transform_1, window_bounds = array<i64: 32, 96>}, {transform_indices = @transform_2, window_bounds = array<i64: 2, 5, 32>}, {pipeline_mode = #tpu.pipeline_mode<synchronous>, transform_indices = @transform_3, window_bounds = array<i64: 1, 15>}, {transform_indices = @transform_4, window_bounds = array<i64: 2, 15>}]} {
    %c0 = arith.constant 0 : index
    %c0_0 = arith.constant 0 : index
    %0 = vector.load %arg1[%c0, %c0_0] : memref<2x32xf32, #tpu.memory_space<vmem>>, vector<2x32xf32>
    %c0_1 = arith.constant 0 : index
    %c0_2 = arith.constant 0 : index
    %1 = vector.load %arg2[%c0_1, %c0_2] : memref<32x96xf32, #tpu.memory_space<vmem>>, vector<32x96xf32>
    %c0_3 = arith.constant 0 : index
    %c0_4 = arith.constant 0 : index
    %c0_5 = arith.constant 0 : index
    %2 = vector.load %arg3[%c0_3, %c0_4, %c0_5] : memref<2x5x32xf32, #tpu.memory_space<vmem>>, vector<2x5x32xf32>
    %cst = arith.constant dense<0.000000e+00> : vector<2x96xf32>
    %3 = tpu.matmul %0, %1, %cst {dimension_numbers = #tpu.dot_dimension_numbers<[1], [0], [0], [1], [0, 0, 1, 1], [], []>} : vector<2x32xf32>, vector<32x96xf32>, vector<2x96xf32> -> vector<2x96xf32>
    %4 = vector.extract_strided_slice %3 {offsets = [0, 0], sizes = [2, 32], strides = [1, 1]} : vector<2x96xf32> to vector<2x32xf32>
    %5 = vector.shape_cast %4 : vector<2x32xf32> to vector<2x1x32xf32>
    %6 = vector.broadcast %5 : vector<2x1x32xf32> to vector<2x5x32xf32>
    %7 = arith.mulf %6, %2 : vector<2x5x32xf32>
    %cst_6 = arith.constant dense<0.000000e+00> : vector<2x5xf32>
    %8 = vector.multi_reduction <add>, %7, %cst_6 [2] : vector<2x5x32xf32> to vector<2x5xf32>
    %9 = vector.extract_strided_slice %3 {offsets = [0, 32], sizes = [2, 32], strides = [1, 1]} : vector<2x96xf32> to vector<2x32xf32>
    %10 = vector.shape_cast %9 : vector<2x32xf32> to vector<2x1x32xf32>
    %11 = vector.broadcast %10 : vector<2x1x32xf32> to vector<2x5x32xf32>
    %12 = arith.mulf %11, %2 : vector<2x5x32xf32>
    %cst_7 = arith.constant dense<0.000000e+00> : vector<2x5xf32>
    %13 = vector.multi_reduction <add>, %12, %cst_7 [2] : vector<2x5x32xf32> to vector<2x5xf32>
    %14 = vector.extract_strided_slice %3 {offsets = [0, 64], sizes = [2, 32], strides = [1, 1]} : vector<2x96xf32> to vector<2x32xf32>
    %15 = vector.shape_cast %14 : vector<2x32xf32> to vector<2x1x32xf32>
    %16 = vector.broadcast %15 : vector<2x1x32xf32> to vector<2x5x32xf32>
    %17 = arith.mulf %16, %2 : vector<2x5x32xf32>
    %cst_8 = arith.constant dense<0.000000e+00> : vector<2x5xf32>
    %18 = vector.multi_reduction <add>, %17, %cst_8 [2] : vector<2x5x32xf32> to vector<2x5xf32>
    %19 = tpu.concatenate %8, %13, %18 in 1 : vector<2x5xf32>, vector<2x5xf32>, vector<2x5xf32> -> vector<2x15xf32>
    %c0_9 = arith.constant 0 : index
    %c0_10 = arith.constant 0 : index
    %20 = vector.load %arg4[%c0_9, %c0_10] : memref<1x15xf32, #tpu.memory_space<vmem>>, vector<1x15xf32>
    %21 = vector.broadcast %20 : vector<1x15xf32> to vector<2x15xf32>
    %22 = arith.addf %19, %21 : vector<2x15xf32>
    %c0_11 = arith.constant 0 : index
    %c0_12 = arith.constant 0 : index
    %23 = vector.load %arg5[%c0_11, %c0_12] : memref<2x15xf32, #tpu.memory_space<vmem>>, vector<2x15xf32>
    tpu.vector_store %arg5[%c0_11, %c0_12], %22 {strides = array<i32>} : memref<2x15xf32, #tpu.memory_space<vmem>>, vector<2x15xf32>,
    return
  }
  func.func @transform_0(%arg0: i32) -> (i32, i32) {
    %c0_i32 = arith.constant 0 : i32
    %c0_i32_0 = arith.constant 0 : i32
    return %arg0, %c0_i32 : i32, i32
  }
  func.func @transform_1(%arg0: i32) -> (i32, i32) {
    %c0_i32 = arith.constant 0 : i32
    %c0_i32_0 = arith.constant 0 : i32
    %c0_i32_1 = arith.constant 0 : i32
    return %c0_i32, %c0_i32_0 : i32, i32
  }
  func.func @transform_2(%arg0: i32) -> (i32, i32, i32) {
    %c0_i32 = arith.constant 0 : i32
    %c0_i32_0 = arith.constant 0 : i32
    %c0_i32_1 = arith.constant 0 : i32
    return %arg0, %c0_i32, %c0_i32_0 : i32, i32, i32
  }
  func.func @transform_3(%arg0: i32) -> (i32, i32) {
    %c0_i32 = arith.constant 0 : i32
    %c0_i32_0 = arith.constant 0 : i32
    %c0_i32_1 = arith.constant 0 : i32
    return %c0_i32, %c0_i32_0 : i32, i32
  }
  func.func @transform_4(%arg0: i32) -> (i32, i32) {
    %c0_i32 = arith.constant 0 : i32
    %c0_i32_0 = arith.constant 0 : i32
    return %arg0, %c0_i32 : i32, i32
  }
}

</mosaic_0001>

<llo_original>
// kernel: tpu_custom_call.1
$region0: #{tpu_custom_call.1}
  #allocation0 [shape = 'u32[]', space=smem, size = 0x4, offset = 0x4, fixed_abs, tag = 'smem constant byte address 0x4 - core index']
  #allocation1 [shape = 'u32[144,128]{1,0:T(1,128)}', space=vmem, size = 0x12000, scoped, tag = 'internal scratch']
  %s0 = inlined_call_operand.vmem [shape: f32[2,32], index: 0, kind: input, shape index: {}]
  %s1 = inlined_call_operand.hbm [shape: f32[32,96], index: 1, kind: input, shape index: {}]
  %s2 = inlined_call_operand.vmem [shape: f32[2,5,32], index: 2, kind: input, shape index: {}]
  %s3 = inlined_call_operand.vmem [shape: f32[1,15], index: 3, kind: input, shape index: {}]
  %s4 = inlined_call_operand.hbm [shape: f32[2,15], index: 4, kind: output, shape index: {}]
  %s5 = sld [smem:[#allocation0]]
  $region30: #{tpu_custom_call.1} parent=0
    _
  %s7 = ssub.s32 1, %s5
  %s8 = scalar_select 0, %s7, %s5
  $region1: #{tpu_custom_call.1} parent=0
    #allocation2 [shape = 'u8[16384]{0}', space=vmem, size = 0x4000, scoped, tag = 'input window, operand 1, single buffered']
    #allocation3 [shape = 's32[1]{0}', space=sflag, size = 0x4, scoped, tag = 'scoped memory for tpu_custom_call.1']
    #allocation4 [shape = 's32[1]{0}', space=sflag, size = 0x4, scoped, tag = 'scoped memory for tpu_custom_call.1']
    #allocation5 [shape = 'u8[1024]{0}', space=vmem, size = 0x400, scoped, tag = 'output window, operand 0, single buffered']
    %9 = vsyncpa [#allocation3], 0
    %10 = vsyncpa [#allocation4], 0
    // Predicated region
    $region2: #{tpu_custom_call.1} parent=1 // pred_check
      _
    $region3: #{tpu_custom_call.1} parent=1 // pred_check_branch
      %12 = sbr.rel (0) target = $region5
    $region4: #{tpu_custom_call.1} parent=1 // pred_region
      _
    $region5: #{tpu_custom_call.1} parent=1 // pred_fallthru
      _
    // Predicated region
    $region6: #{tpu_custom_call.1} parent=1 // pred_check
      _
    $region7: #{tpu_custom_call.1} parent=1 // pred_check_branch
      %14 = sbr.rel (0) target = $region9
    $region8: #{tpu_custom_call.1} parent=1 // pred_region
      %s16 = ssub.s32 512, 512
      %17 = vsyncadd [#allocation3], %s16
      %s18 = sshll.u32 [#allocation2], 4
      %s19 = int_to_ptr.vmem [resolvable:$true] %s18
      %24 = dma.hbm_to_vmem [thread:$0]  %s1, 512, %s19, [#allocation3], 128, 128, 8
    $region9: #{tpu_custom_call.1} parent=1 // pred_fallthru
      _
    // Predicated region
    $region10: #{tpu_custom_call.1} parent=1 // pred_check
      _
    $region11: #{tpu_custom_call.1} parent=1 // pred_check_branch
      %26 = sbr.rel (0) target = $region13
    $region12: #{tpu_custom_call.1} parent=1 // pred_region
      _
    $region13: #{tpu_custom_call.1} parent=1 // pred_fallthru
      _
    // Predicated region
    $region14: #{tpu_custom_call.1} parent=1 // pred_check
      _
    $region15: #{tpu_custom_call.1} parent=1 // pred_check_branch
      %28 = sbr.rel (0) target = $region17
    $region16: #{tpu_custom_call.1} parent=1 // pred_region
      _
    $region17: #{tpu_custom_call.1} parent=1 // pred_fallthru
      _
    // Predicated region
    $region18: #{tpu_custom_call.1} parent=1 // pred_check
      _
    $region19: #{tpu_custom_call.1} parent=1 // pred_check_branch
      %30 = sbr.rel (0) target = $region21
    $region20: #{tpu_custom_call.1} parent=1 // pred_region
      %31 = dma.done [#allocation3], 512
    $region21: #{tpu_custom_call.1} parent=1 // pred_fallthru
      _
    %v32 = vld [vmem:[%s0] sm:$0x3]
    %v33 = vld [vmem:[#allocation2] sm:$0xff]
    %v34 = vld [vmem:[#allocation2 + $0x8] sm:$0xff]
    %v35 = vld [vmem:[#allocation2 + $0x10] sm:$0xff]
    %v36 = vld [vmem:[#allocation2 + $0x18] sm:$0xff]
    %v37 = vld [vmem:[%s2] sm:$0x1f]
    %v38 = vld [vmem:[%s2 + $0x8] sm:$0x1f]
    %vm39 = vcmask 261120
    %v41 = vsel %vm39, %v32, 0
    %43 = vmatprep.subr.mxu0 0.0
    %44 = vmatpush1.msra.mxu0 %v33
    %45 = vmatprep.subr.mxu0 0.0
    %46 = vmatpush1.msra.mxu0 %v34
    %47 = vmatprep.subr.mxu0 0.0
    %48 = vmatpush1.msra.mxu0 %v35
    %49 = vmatprep.subr.mxu0 0.0
    %50 = vmatpush1.msra.mxu0 %v36
    %51 = vmatprep.subr.mxu0 0.0
    %52 = vmatpush1.msra.mxu0 0.0
    %53 = vmatprep.subr.mxu0 0.0
    %54 = vmatpush1.msra.mxu0 0.0
    %55 = vmatprep.subr.mxu0 0.0
    %56 = vmatpush1.msra.mxu0 0.0
    %57 = vmatprep.subr.mxu0 0.0
    %58 = vmatpush1.msra.mxu0 0.0
    %59 = vmatprep.subr.mxu0 0.0
    %60 = vmatpush1.msra.mxu0 0.0
    %61 = vmatprep.subr.mxu0 0.0
    %62 = vmatpush1.msra.mxu0 0.0
    %63 = vmatprep.subr.mxu0 0.0
    %64 = vmatpush1.msra.mxu0 0.0
    %65 = vmatprep.subr.mxu0 0.0
    %66 = vmatpush1.msra.mxu0 0.0
    %67 = vmatprep.subr.mxu0 0.0
    %68 = vmatpush1.msra.mxu0 0.0
    %69 = vmatprep.subr.mxu0 0.0
    %70 = vmatpush1.msra.mxu0 0.0
    %71 = vmatprep.subr.mxu0 0.0
    %72 = vmatpush1.msra.mxu0 0.0
    %73 = vmatprep.subr.mxu0 0.0
    %74 = vmatpush1.msra.mxu0 0.0
    %75 = vmatprep.subr.mxu0 0.0
    %76 = vmatpush1.msra.mxu0 0.0
    %77 = vmatprep.subr.mxu0 0.0
    %78 = vmatpush1.msra.mxu0 0.0
    %79 = vmatprep.subr.mxu0 0.0
    %80 = vmatpush1.msra.mxu0 0.0
    %81 = vmatprep.subr.mxu0 0.0
    %82 = vmatpush1.msra.mxu0 0.0
    %83 = vmatprep.subr.mxu0 0.0
    %84 = vmatpush1.msra.mxu0 0.0
    %85 = vmatprep.subr.mxu0 0.0
    %86 = vmatpush1.msra.mxu0 0.0
    %87 = vmatprep.subr.mxu0 0.0
    %88 = vmatpush1.msra.mxu0 0.0
    %89 = vmatprep.subr.mxu0 0.0
    %90 = vmatpush1.msra.mxu0 0.0
    %91 = vmatprep.subr.mxu0 0.0
    %92 = vmatpush1.msra.mxu0 0.0
    %93 = vmatprep.subr.mxu0 0.0
    %94 = vmatpush1.msra.mxu0 0.0
    %95 = vmatprep.subr.mxu0 0.0
    %96 = vmatpush1.msra.mxu0 0.0
    %97 = vmatprep.subr.mxu0 0.0
    %98 = vmatpush1.msra.mxu0 0.0
    %99 = vmatprep.subr.mxu0 0.0
    %100 = vmatpush1.msra.mxu0 0.0
    %101 = vmatprep.subr.mxu0 0.0
    %102 = vmatpush1.msra.mxu0 0.0
    %103 = vmatprep.subr.mxu0 0.0
    %104 = vmatpush1.msra.mxu0 0.0
    %105 = vmatprep.subr.mxu0 0.0
    %106 = vmatpush1.msra.mxu0 0.0
    %107 = vmatprep.mubr.f32.mxu0 0.0
    %108 = vmatmul.mubr.f32.gmra.mrb[0].mxu0 %v41
    %v109 = vpop.f32.mrb[0].mxu0
    %v110 = vadd.f32 0.0, %v109
    %v111 = vpop.f32.mrb[0].mxu0
    %112 = vdwg.mxu0
    %v115 = vunpack.c.l.s4 1966171168
    %v116 = vunpack.c.0.s8 %v115
    %v117 = vlaneseq
    %v118 = vshrl.u32 %v117, 7
    %v119 = vsub.s32 %v116, %v118
    %v120 = vrot.slane %v110, %v119
    %v121 = vcombine.high %v120, %v120
    %v123 = vunpack.c.l.s4 1966171168
    %v124 = vunpack.c.0.s8 %v123
    %v125 = vlaneseq
    %v126 = vshrl.u32 %v125, 7
    %v127 = vsub.s32 %v124, %v126
    %v128 = vrot.slane %v120, %v127
    %v130 = vunpack.c.l.s4 1966171168
    %v131 = vunpack.c.0.s8 %v130
    %v132 = vlaneseq
    %v133 = vshrl.u32 %v132, 7
    %v134 = vsub.s32 %v131, %v133
    %v135 = vrot.slane %v121, %v134
    %v136 = vlaneseq
    %v137 = vshrl.u32 %v136, 7
    %v138 = vsub.s32 0, %v137
    %v139 = vrot.slane %v128, %v138
    %v140 = vlaneseq
    %v141 = vshrl.u32 %v140, 7
    %v142 = vsub.s32 0, %v141
    %v143 = vrot.slane %v135, %v142
    %v146 = vmul.f32 %v139, %v37
    %v147 = vmul.f32 %v143, %v38
    %vm148 = vcmask 258048
    %v149 = vsel %vm148, %v146, 0.0
    %150 = vadd.xlane.f32.xlu0 %v149
    %v151 = vpop.xlane.xlu0 %150
    %v152 = vsel %vm148, %v147, 0.0
    %153 = vadd.xlane.f32.xlu0 %v152
    %v154 = vpop.xlane.xlu0 %153
    %157 = vrot.lane.b32.xlu0 %v37, 32
    %v158 = vpop.permute.xlu0 %157
    %159 = vrot.lane.b32.xlu0 %v38, 32
    %v160 = vpop.permute.xlu0 %159
    %v163 = vmul.f32 %v139, %v158
    %v164 = vmul.f32 %v143, %v160
    %167 = vrot.lane.b32.xlu0 %v163, 96
    %v168 = vpop.permute.xlu0 %167
    %169 = vrot.lane.b32.xlu0 %v164, 96
    %v170 = vpop.permute.xlu0 %169
    %v173 = vsel %vm148, %v168, 0.0
    %174 = vadd.xlane.f32.xlu0 %v173
    %v175 = vpop.xlane.xlu0 %174
    %v176 = vsel %vm148, %v170, 0.0
    %177 = vadd.xlane.f32.xlu0 %v176
    %v178 = vpop.xlane.xlu0 %177
    %179 = vrot.lane.b32.xlu0 %v37, 64
    %v180 = vpop.permute.xlu0 %179
    %181 = vrot.lane.b32.xlu0 %v38, 64
    %v182 = vpop.permute.xlu0 %181
    %v185 = vmul.f32 %v139, %v180
    %v186 = vmul.f32 %v143, %v182
    %189 = vrot.lane.b32.xlu0 %v185, 64
    %v190 = vpop.permute.xlu0 %189
    %191 = vrot.lane.b32.xlu0 %v186, 64
    %v192 = vpop.permute.xlu0 %191
    %v195 = vsel %vm148, %v190, 0.0
    %196 = vadd.xlane.f32.xlu0 %v195
    %v197 = vpop.xlane.xlu0 %196
    %v198 = vsel %vm148, %v192, 0.0
    %199 = vadd.xlane.f32.xlu0 %v198
    %v200 = vpop.xlane.xlu0 %199
    %v203 = vlaneseq
    %v204 = vand.u32 %v203, 127
    %v205 = vlaneseq
    %v206 = vshrl.u32 %v205, 7
    %v207 = vsub.s32 %v204, %v206
    %v208 = vrot.slane %v151, %v207
    %v209 = vlaneseq
    %v210 = vshrl.u32 %v209, 7
    %v211 = vsub.s32 %v204, %v210
    %v212 = vrot.slane %v154, %v211
    %vm213 = vcmask 1041409
    %v214 = vsel %vm213, %v212, %v208
    %v218 = vadd.s32 %v204, 4294967291
    %v219 = vlaneseq
    %v220 = vshrl.u32 %v219, 7
    %v221 = vsub.s32 %v218, %v220
    %v222 = vrot.slane %v175, %v221
    %v223 = vlaneseq
    %v224 = vshrl.u32 %v223, 7
    %v225 = vsub.s32 %v218, %v224
    %v226 = vrot.slane %v178, %v225
    %v227 = vsel %vm213, %v226, %v222
    %v231 = vadd.s32 %v204, 4294967286
    %v232 = vlaneseq
    %v233 = vshrl.u32 %v232, 7
    %v234 = vsub.s32 %v231, %v233
    %v235 = vrot.slane %v197, %v234
    %v236 = vlaneseq
    %v237 = vshrl.u32 %v236, 7
    %v238 = vsub.s32 %v231, %v237
    %v239 = vrot.slane %v200, %v238
    %v240 = vsel %vm213, %v239, %v235
    %vm242 = vcmask 39936
    %v243 = vsel %vm242, %v214, %v227
    %vm244 = vcmask 80896
    %v245 = vsel %vm244, %v243, %v240
    %v246 = vld [vmem:[%s3] sm:$0x1]
    %v248 = vlaneseq
    %v249 = vshrl.u32 %v248, 7
    %v250 = vsub.s32 0, %v249
    %v251 = vrot.slane %v246, %v250
    %v253 = vadd.f32 %v245, %v251
    %vm254 = vcmask 115712
    %255 = vst.msk [vmem:[#allocation5] sm:$0x3] %vm254, %v253
    // Predicated region
    $region22: #{tpu_custom_call.1} parent=1 // pred_check
      _
    $region23: #{tpu_custom_call.1} parent=1 // pred_check_branch
      %257 = sbr.rel (0) target = $region25
    $region24: #{tpu_custom_call.1} parent=1 // pred_region
      %s259 = ssub.s32 32, 32
      %260 = vsyncadd [#allocation4], %s259
      %s262 = sshll.u32 [#allocation5], 4
      %s263 = int_to_ptr.vmem [resolvable:$true] %s262
      %265 = dma.vmem_to_hbm [thread:$0]  %s263, 32, %s4, [#allocation4]
    $region25: #{tpu_custom_call.1} parent=1 // pred_fallthru
      _
    // Predicated region
    $region26: #{tpu_custom_call.1} parent=1 // pred_check
      _
    $region27: #{tpu_custom_call.1} parent=1 // pred_check_branch
      %267 = sbr.rel (0) target = $region29
    $region28: #{tpu_custom_call.1} parent=1 // pred_region
      %268 = dma.done [#allocation4], 32
    $region29: #{tpu_custom_call.1} parent=1 // pred_fallthru
      _
    %269 = vsyncpa [#allocation3], 1
    %270 = vsyncpa [#allocation4], 1

</llo_original>
